<compile_context>
chip_gen: v7x
topology: tpu7x:2x2x1
jax: 0.10.0
libtpu: 0.0.40
codegen_flags: <defaults>
</compile_context>

<pallas_src>
import jax
import jax.numpy as jnp
import numpy as np
from jax import lax
from jax.experimental import pallas as pl
from jax.experimental.pallas import tpu as pltpu


def _round_up(x, m):
    return ((x + m - 1) // m) * m


def _msdn_kernel(batch, a_pad, r_pad):
    """Kernel factory: static geometry baked in as Python constants."""

    def kernel(fs_ref, w_ref, att_t_ref, bias_r_ref, bias_a_ref, out_ref):
        fs = fs_ref[...]          # (dim_f, B*R_pad)  bf16 — batch folded in lanes
        wstk = w_ref[...]         # (4*A_pad, dim_f)  bf16 — stacked folded weights
        att_t = att_t_ref[...]    # (A_pad, NC_pad)   f32  — att^T, zero-padded
        bias_r = bias_r_ref[...]  # (1, R_pad)        0 / -1e30 region-pad bias
        bias_a = bias_a_ref[...]  # (A_pad, 1)        0 / -1e30 attribute-pad bias

        # One MXU pass: all four folded weight matrices against all batches'
        # regions (B*R_pad output lanes).
        prods = jnp.dot(wstk, fs, preferred_element_type=jnp.float32)  # (4A, B*Rp)

        rows = []
        for b in range(batch):             # static unroll; slices tile-aligned
            lo = b * r_pad                  # lane offset, multiple of 128
            blk = prods[:, lo:lo + r_pad]   # (4*A_pad, R_pad)
            s1 = blk[0 * a_pad:1 * a_pad, :]               # w1 * V@W_1     @ Fs_b
            a1l = blk[1 * a_pad:2 * a_pad, :] + bias_r     #      V@W_2     @ Fs_b
            s2t = blk[2 * a_pad:3 * a_pad, :]              # w2 * V@W_1_1^T @ Fs_b
            a2l = blk[3 * a_pad:4 * a_pad, :] + bias_a     #      V@W_2_1   @ Fs_b

            # branch 1: softmax over regions (lane axis)
            a1 = jnp.exp(a1l - jnp.max(a1l, axis=-1, keepdims=True))
            a1 = a1 / jnp.sum(a1, axis=-1, keepdims=True)
            # branch 2: softmax over attributes (sublane axis)
            a2 = jnp.exp(a2l - jnp.max(a2l, axis=0, keepdims=True))
            a2 = a2 / jnp.sum(a2, axis=0, keepdims=True)

            # w1 / w2 are already folded into s1 / s2t.
            p = a1 * s1 + a2 * s2t                         # (A_pad, R_pad)
            sp = jnp.sum(p, axis=-1, keepdims=True)        # (A_pad, 1)
            # embed_b[k] = sum_i sp[i] * att[k, i]: lane-broadcast multiply +
            # sublane reduce — no sublane->lane relayout, no transposed matmul.
            rows.append(jnp.sum(sp * att_t, axis=0, keepdims=True))   # (1, NC_pad)

        out = rows[0] if batch == 1 else jnp.concatenate(rows, axis=0)
        out_ref[...] = out.astype(out_ref.dtype)           # one lane-dense store

    return kernel


def msdn_embed(Fs_nchw, params, w1, w2):
    """Fs_nchw: (B, dim_f, H, W) float32. Returns embed: (B, nclass)."""
    B, dim_f, H, W = Fs_nchw.shape
    R = H * W

    V = params["V"]            # (dim_att, dim_v)
    W_1 = params["W_1"]        # (dim_v, dim_f)
    W_2 = params["W_2"]        # (dim_v, dim_f)
    W_1_1 = params["W_1_1"]    # (dim_f, dim_v)
    W_2_1 = params["W_2_1"]    # (dim_v, dim_f)
    att = params["att"]        # (nclass, dim_att)

    dim_att = V.shape[0]
    nclass = att.shape[0]

    R_pad = _round_up(R, 128)        # lane dim
    A_pad = _round_up(dim_att, 8)    # sublane dim
    NC_pad = _round_up(nclass, 128)  # lane-dense output store

    # Fold the batch dim into the lane axis: (dim_f, B*R_pad), bf16 MXU operand.
    Fs = Fs_nchw.reshape(B, dim_f, R).astype(jnp.float32)
    if R_pad > R:
        Fs = jnp.pad(Fs, ((0, 0), (0, 0), (0, R_pad - R)))
    fs_folded = jnp.transpose(Fs, (1, 0, 2)).reshape(dim_f, B * R_pad)
    fs_folded = fs_folded.astype(jnp.bfloat16)

    # Parameter-only folds (done once in the wrapper); w1/w2 folded into the
    # score branches; zero-pad attribute rows; stack into one MXU LHS.
    def pad_attr_rows(m):
        if A_pad > dim_att:
            return jnp.pad(m, ((0, A_pad - dim_att), (0, 0)))
        return m

    vw1 = pad_attr_rows(w1 * (V @ W_1))
    vw2 = pad_attr_rows(V @ W_2)
    vw11t = pad_attr_rows(w2 * (V @ W_1_1.T))
    vw21 = pad_attr_rows(V @ W_2_1)
    w_stack = jnp.concatenate([vw1, vw2, vw11t, vw21], axis=0).astype(jnp.bfloat16)

    att_t = att.T.astype(jnp.float32)                       # (dim_att, nclass)
    att_t = jnp.pad(att_t, ((0, A_pad - dim_att), (0, NC_pad - nclass)))

    # Additive pad-masking biases (replace in-kernel iota/cmp/select masks).
    bias_r = jnp.where(jnp.arange(R_pad) < R, 0.0, -1e30)
    bias_r = bias_r.astype(jnp.float32).reshape(1, R_pad)
    bias_a = jnp.where(jnp.arange(A_pad) < dim_att, 0.0, -1e30)
    bias_a = bias_a.astype(jnp.float32).reshape(A_pad, 1)

    out = pl.pallas_call(
        _msdn_kernel(B, A_pad, R_pad),
        out_shape=jax.ShapeDtypeStruct((B, NC_pad), jnp.float32),
        grid=(1,),
        in_specs=[
            pl.BlockSpec((dim_f, B * R_pad), lambda i: (0, 0)),
            pl.BlockSpec((4 * A_pad, dim_f), lambda i: (0, 0)),
            pl.BlockSpec((A_pad, NC_pad), lambda i: (0, 0)),
            pl.BlockSpec((1, R_pad), lambda i: (0, 0)),
            pl.BlockSpec((A_pad, 1), lambda i: (0, 0)),
        ],
        out_specs=pl.BlockSpec((B, NC_pad), lambda i: (0, 0)),
        compiler_params=pltpu.CompilerParams(
            dimension_semantics=("arbitrary",)),
    )(fs_folded, w_stack, att_t, bias_r, bias_a)

    return out[:, :nclass]


def msdn_embed_reference(Fs_nchw, params, w1, w2):
    """Pure-JAX mirror of the PyTorch forward (default flags), for validation."""
    B, dim_f, H, W = Fs_nchw.shape
    Fs = Fs_nchw.reshape(B, dim_f, H * W).astype(jnp.float32)
    V = params["V"]
    att = params["att"]
    # branch 1
    S = jnp.einsum("iv,vf,bfr->bir", V, params["W_1"], Fs)
    A = jax.nn.softmax(jnp.einsum("iv,vf,bfr->bir", V, params["W_2"], Fs), axis=-1)
    S_p = jnp.einsum("bir,bir->bi", A, S)
    S_pp1 = jnp.sum(jnp.einsum("ki,bi->bik", att, S_p), axis=1)
    # branch 2
    S2 = jnp.einsum("bfr,fv,iv->bri", Fs, params["W_1_1"], V)
    A2 = jax.nn.softmax(jnp.einsum("iv,vf,bfr->bir", V, params["W_2_1"], Fs), axis=1)
    S_p2 = jnp.einsum("bir,bri->bi", A2, S2)
    S_pp2 = jnp.sum(jnp.einsum("ki,bi->bik", att, S_p2), axis=1)
    return w1 * S_pp1 + w2 * S_pp2


if __name__ == "__main__":
    # Small synthetic config (mirrors config.dim_f / dim_v / num_class /
    # num_attribute / w1 / w2 of the PyTorch module).
    B, dim_f, H, W = 2, 32, 4, 4
    dim_v, dim_att, nclass = 16, 24, 10
    w1, w2 = 0.7, 0.3

    key = jax.random.PRNGKey(0)
    ks = jax.random.split(key, 7)
    params = {
        "att":   jax.random.normal(ks[0], (nclass, dim_att), jnp.float32),
        "V":     jax.random.normal(ks[1], (dim_att, dim_v), jnp.float32) * 0.1,
        "W_1":   jax.random.normal(ks[2], (dim_v, dim_f), jnp.float32) * 0.1,
        "W_2":   jax.random.normal(ks[3], (dim_v, dim_f), jnp.float32) * 0.1,
        "W_1_1": jax.random.normal(ks[4], (dim_f, dim_v), jnp.float32) * 0.1,
        "W_2_1": jax.random.normal(ks[5], (dim_v, dim_f), jnp.float32) * 0.1,
    }
    Fs = jax.random.normal(ks[6], (B, dim_f, H, W), jnp.float32)

    out = msdn_embed(Fs, params, w1, w2)
    out = jax.block_until_ready(out)

    ref = msdn_embed_reference(Fs, params, w1, w2)
    # Residual error now comes from the bf16 MXU operands (f32 accumulation);
    # the approximate-reciprocal softmax of the previous version is gone.
    np.testing.assert_allclose(np.asarray(out), np.asarray(ref),
                               rtol=2e-2, atol=2e-2)
    print("KERNEL_OK")
</pallas_src>

<mosaic_0001>
module attributes {stable_mosaic.version = 11 : i64} {
  func.func @kernel(%arg0: i32, %arg1: memref<32x256xbf16, #tpu.memory_space<vmem>>, %arg2: memref<96x32xbf16, #tpu.memory_space<vmem>>, %arg3: memref<24x128xf32, #tpu.memory_space<vmem>>, %arg4: memref<1x128xf32, #tpu.memory_space<vmem>>, %arg5: memref<24x1xf32, #tpu.memory_space<vmem>>, %arg6: memref<2x128xf32, #tpu.memory_space<vmem>>) attributes {dimension_semantics = [#tpu.dimension_semantics<arbitrary>], iteration_bounds = array<i64: 1>, scalar_prefetch = 0 : i64, scratch_operands = 0 : i64, tpu.core_type = #tpu.core_type<tc>, window_params = [{pipeline_mode = #tpu.pipeline_mode<synchronous>, transform_indices = @transform_0, window_bounds = array<i64: 32, 256>}, {pipeline_mode = #tpu.pipeline_mode<synchronous>, transform_indices = @transform_1, window_bounds = array<i64: 96, 32>}, {pipeline_mode = #tpu.pipeline_mode<synchronous>, transform_indices = @transform_2, window_bounds = array<i64: 24, 128>}, {pipeline_mode = #tpu.pipeline_mode<synchronous>, transform_indices = @transform_3, window_bounds = array<i64: 1, 128>}, {pipeline_mode = #tpu.pipeline_mode<synchronous>, transform_indices = @transform_4, window_bounds = array<i64: 24, 1>}, {pipeline_mode = #tpu.pipeline_mode<synchronous>, transform_indices = @transform_5, window_bounds = array<i64: 2, 128>}]} {
    %c0 = arith.constant 0 : index
    %c0_0 = arith.constant 0 : index
    %0 = vector.load %arg1[%c0, %c0_0] : memref<32x256xbf16, #tpu.memory_space<vmem>>, vector<32x256xbf16>
    %c0_1 = arith.constant 0 : index
    %c0_2 = arith.constant 0 : index
    %1 = vector.load %arg2[%c0_1, %c0_2] : memref<96x32xbf16, #tpu.memory_space<vmem>>, vector<96x32xbf16>
    %c0_3 = arith.constant 0 : index
    %c0_4 = arith.constant 0 : index
    %2 = vector.load %arg3[%c0_3, %c0_4] : memref<24x128xf32, #tpu.memory_space<vmem>>, vector<24x128xf32>
    %c0_5 = arith.constant 0 : index
    %c0_6 = arith.constant 0 : index
    %3 = vector.load %arg4[%c0_5, %c0_6] : memref<1x128xf32, #tpu.memory_space<vmem>>, vector<1x128xf32>
    %c0_7 = arith.constant 0 : index
    %c0_8 = arith.constant 0 : index
    %4 = vector.load %arg5[%c0_7, %c0_8] : memref<24x1xf32, #tpu.memory_space<vmem>>, vector<24x1xf32>
    %cst = arith.constant dense<0.000000e+00> : vector<96x256xf32>
    %5 = tpu.matmul %1, %0, %cst {dimension_numbers = #tpu.dot_dimension_numbers<[1], [0], [0], [1], [0, 0, 1, 1], [], []>} : vector<96x32xbf16>, vector<32x256xbf16>, vector<96x256xf32> -> vector<96x256xf32>
    %6 = vector.extract_strided_slice %5 {offsets = [0, 0], sizes = [96, 128], strides = [1, 1]} : vector<96x256xf32> to vector<96x128xf32>
    %7 = vector.extract_strided_slice %6 {offsets = [0, 0], sizes = [24, 128], strides = [1, 1]} : vector<96x128xf32> to vector<24x128xf32>
    %8 = vector.extract_strided_slice %6 {offsets = [24, 0], sizes = [24, 128], strides = [1, 1]} : vector<96x128xf32> to vector<24x128xf32>
    %9 = vector.broadcast %3 : vector<1x128xf32> to vector<24x128xf32>
    %10 = arith.addf %8, %9 : vector<24x128xf32>
    %11 = vector.extract_strided_slice %6 {offsets = [48, 0], sizes = [24, 128], strides = [1, 1]} : vector<96x128xf32> to vector<24x128xf32>
    %12 = vector.extract_strided_slice %6 {offsets = [72, 0], sizes = [24, 128], strides = [1, 1]} : vector<96x128xf32> to vector<24x128xf32>
    %13 = vector.broadcast %4 : vector<24x1xf32> to vector<24x128xf32>
    %14 = arith.addf %12, %13 : vector<24x128xf32>
    %cst_9 = arith.constant dense<0xFF800000> : vector<24xf32>
    %15 = vector.multi_reduction <maximumf>, %10, %cst_9 [1] : vector<24x128xf32> to vector<24xf32>
    %16 = vector.shape_cast %15 : vector<24xf32> to vector<24x1xf32>
    %17 = vector.broadcast %16 : vector<24x1xf32> to vector<24x128xf32>
    %18 = arith.subf %10, %17 : vector<24x128xf32>
    %19 = math.exp %18 : vector<24x128xf32>
    %cst_10 = arith.constant dense<0.000000e+00> : vector<24xf32>
    %20 = vector.multi_reduction <add>, %19, %cst_10 [1] : vector<24x128xf32> to vector<24xf32>
    %21 = vector.shape_cast %20 : vector<24xf32> to vector<24x1xf32>
    %22 = vector.broadcast %21 : vector<24x1xf32> to vector<24x128xf32>
    %23 = arith.divf %19, %22 : vector<24x128xf32>
    %cst_11 = arith.constant dense<0xFF800000> : vector<128xf32>
    %24 = vector.multi_reduction <maximumf>, %14, %cst_11 [0] : vector<24x128xf32> to vector<128xf32>
    %25 = vector.shape_cast %24 : vector<128xf32> to vector<1x128xf32>
    %26 = vector.broadcast %25 : vector<1x128xf32> to vector<24x128xf32>
    %27 = arith.subf %14, %26 : vector<24x128xf32>
    %28 = math.exp %27 : vector<24x128xf32>
    %cst_12 = arith.constant dense<0.000000e+00> : vector<128xf32>
    %29 = vector.multi_reduction <add>, %28, %cst_12 [0] : vector<24x128xf32> to vector<128xf32>
    %30 = vector.shape_cast %29 : vector<128xf32> to vector<1x128xf32>
    %31 = vector.broadcast %30 : vector<1x128xf32> to vector<24x128xf32>
    %32 = arith.divf %28, %31 : vector<24x128xf32>
    %33 = arith.mulf %23, %7 : vector<24x128xf32>
    %34 = arith.mulf %32, %11 : vector<24x128xf32>
    %35 = arith.addf %33, %34 : vector<24x128xf32>
    %cst_13 = arith.constant dense<0.000000e+00> : vector<24xf32>
    %36 = vector.multi_reduction <add>, %35, %cst_13 [1] : vector<24x128xf32> to vector<24xf32>
    %37 = vector.shape_cast %36 : vector<24xf32> to vector<24x1xf32>
    %38 = vector.broadcast %37 : vector<24x1xf32> to vector<24x128xf32>
    %39 = arith.mulf %38, %2 : vector<24x128xf32>
    %cst_14 = arith.constant dense<0.000000e+00> : vector<128xf32>
    %40 = vector.multi_reduction <add>, %39, %cst_14 [0] : vector<24x128xf32> to vector<128xf32>
    %41 = vector.shape_cast %40 : vector<128xf32> to vector<1x128xf32>
    %42 = vector.extract_strided_slice %5 {offsets = [0, 128], sizes = [96, 128], strides = [1, 1]} : vector<96x256xf32> to vector<96x128xf32>
    %43 = vector.extract_strided_slice %42 {offsets = [0, 0], sizes = [24, 128], strides = [1, 1]} : vector<96x128xf32> to vector<24x128xf32>
    %44 = vector.extract_strided_slice %42 {offsets = [24, 0], sizes = [24, 128], strides = [1, 1]} : vector<96x128xf32> to vector<24x128xf32>
    %45 = vector.broadcast %3 : vector<1x128xf32> to vector<24x128xf32>
    %46 = arith.addf %44, %45 : vector<24x128xf32>
    %47 = vector.extract_strided_slice %42 {offsets = [48, 0], sizes = [24, 128], strides = [1, 1]} : vector<96x128xf32> to vector<24x128xf32>
    %48 = vector.extract_strided_slice %42 {offsets = [72, 0], sizes = [24, 128], strides = [1, 1]} : vector<96x128xf32> to vector<24x128xf32>
    %49 = vector.broadcast %4 : vector<24x1xf32> to vector<24x128xf32>
    %50 = arith.addf %48, %49 : vector<24x128xf32>
    %cst_15 = arith.constant dense<0xFF800000> : vector<24xf32>
    %51 = vector.multi_reduction <maximumf>, %46, %cst_15 [1] : vector<24x128xf32> to vector<24xf32>
    %52 = vector.shape_cast %51 : vector<24xf32> to vector<24x1xf32>
    %53 = vector.broadcast %52 : vector<24x1xf32> to vector<24x128xf32>
    %54 = arith.subf %46, %53 : vector<24x128xf32>
    %55 = math.exp %54 : vector<24x128xf32>
    %cst_16 = arith.constant dense<0.000000e+00> : vector<24xf32>
    %56 = vector.multi_reduction <add>, %55, %cst_16 [1] : vector<24x128xf32> to vector<24xf32>
    %57 = vector.shape_cast %56 : vector<24xf32> to vector<24x1xf32>
    %58 = vector.broadcast %57 : vector<24x1xf32> to vector<24x128xf32>
    %59 = arith.divf %55, %58 : vector<24x128xf32>
    %cst_17 = arith.constant dense<0xFF800000> : vector<128xf32>
    %60 = vector.multi_reduction <maximumf>, %50, %cst_17 [0] : vector<24x128xf32> to vector<128xf32>
    %61 = vector.shape_cast %60 : vector<128xf32> to vector<1x128xf32>
    %62 = vector.broadcast %61 : vector<1x128xf32> to vector<24x128xf32>
    %63 = arith.subf %50, %62 : vector<24x128xf32>
    %64 = math.exp %63 : vector<24x128xf32>
    %cst_18 = arith.constant dense<0.000000e+00> : vector<128xf32>
    %65 = vector.multi_reduction <add>, %64, %cst_18 [0] : vector<24x128xf32> to vector<128xf32>
    %66 = vector.shape_cast %65 : vector<128xf32> to vector<1x128xf32>
    %67 = vector.broadcast %66 : vector<1x128xf32> to vector<24x128xf32>
    %68 = arith.divf %64, %67 : vector<24x128xf32>
    %69 = arith.mulf %59, %43 : vector<24x128xf32>
    %70 = arith.mulf %68, %47 : vector<24x128xf32>
    %71 = arith.addf %69, %70 : vector<24x128xf32>
    %cst_19 = arith.constant dense<0.000000e+00> : vector<24xf32>
    %72 = vector.multi_reduction <add>, %71, %cst_19 [1] : vector<24x128xf32> to vector<24xf32>
    %73 = vector.shape_cast %72 : vector<24xf32> to vector<24x1xf32>
    %74 = vector.broadcast %73 : vector<24x1xf32> to vector<24x128xf32>
    %75 = arith.mulf %74, %2 : vector<24x128xf32>
    %cst_20 = arith.constant dense<0.000000e+00> : vector<128xf32>
    %76 = vector.multi_reduction <add>, %75, %cst_20 [0] : vector<24x128xf32> to vector<128xf32>
    %77 = vector.shape_cast %76 : vector<128xf32> to vector<1x128xf32>
    %78 = tpu.concatenate %41, %77 in 0 : vector<1x128xf32>, vector<1x128xf32> -> vector<2x128xf32>
    %c0_21 = arith.constant 0 : index
    %c0_22 = arith.constant 0 : index
    %79 = vector.load %arg6[%c0_21, %c0_22] : memref<2x128xf32, #tpu.memory_space<vmem>>, vector<2x128xf32>
    tpu.vector_store %arg6[%c0_21, %c0_22], %78 {strides = array<i32>} : memref<2x128xf32, #tpu.memory_space<vmem>>, vector<2x128xf32>,
    return
  }
  func.func @transform_0(%arg0: i32) -> (i32, i32) {
    %c0_i32 = arith.constant 0 : i32
    %c0_i32_0 = arith.constant 0 : i32
    %c0_i32_1 = arith.constant 0 : i32
    return %c0_i32, %c0_i32_0 : i32, i32
  }
  func.func @transform_1(%arg0: i32) -> (i32, i32) {
    %c0_i32 = arith.constant 0 : i32
    %c0_i32_0 = arith.constant 0 : i32
    %c0_i32_1 = arith.constant 0 : i32
    return %c0_i32, %c0_i32_0 : i32, i32
  }
  func.func @transform_2(%arg0: i32) -> (i32, i32) {
    %c0_i32 = arith.constant 0 : i32
    %c0_i32_0 = arith.constant 0 : i32
    %c0_i32_1 = arith.constant 0 : i32
    return %c0_i32, %c0_i32_0 : i32, i32
  }
  func.func @transform_3(%arg0: i32) -> (i32, i32) {
    %c0_i32 = arith.constant 0 : i32
    %c0_i32_0 = arith.constant 0 : i32
    %c0_i32_1 = arith.constant 0 : i32
    return %c0_i32, %c0_i32_0 : i32, i32
  }
  func.func @transform_4(%arg0: i32) -> (i32, i32) {
    %c0_i32 = arith.constant 0 : i32
    %c0_i32_0 = arith.constant 0 : i32
    %c0_i32_1 = arith.constant 0 : i32
    return %c0_i32, %c0_i32_0 : i32, i32
  }
  func.func @transform_5(%arg0: i32) -> (i32, i32) {
    %c0_i32 = arith.constant 0 : i32
    %c0_i32_0 = arith.constant 0 : i32
    %c0_i32_1 = arith.constant 0 : i32
    return %c0_i32, %c0_i32_0 : i32, i32
  }
}

</mosaic_0001>

<llo_original>
// kernel: tpu_custom_call.1
$region0: #{tpu_custom_call.1}
  #allocation0 [shape = 'u32[]', space=smem, size = 0x4, offset = 0x4, fixed_abs, tag = 'smem constant byte address 0x4 - core index']
  #allocation1 [shape = 'u32[144,128]{1,0:T(1,128)}', space=vmem, size = 0x12000, scoped, tag = 'internal scratch']
  %s0 = inlined_call_operand.vmem [shape: bf16[32,256], index: 0, kind: input, shape index: {}]
  %s1 = inlined_call_operand.vmem [shape: bf16[96,32], index: 1, kind: input, shape index: {}]
  %s2 = inlined_call_operand.vmem [shape: f32[24,128], index: 2, kind: input, shape index: {}]
  %s3 = inlined_call_operand.vmem [shape: f32[1,128], index: 3, kind: input, shape index: {}]
  %s4 = inlined_call_operand.vmem [shape: f32[24,1], index: 4, kind: input, shape index: {}]
  %s5 = inlined_call_operand.hbm [shape: f32[2,128], index: 5, kind: output, shape index: {}]
  %s6 = sld [smem:[#allocation0]]
  $region30: #{tpu_custom_call.1} parent=0
    _
  %s8 = ssub.s32 1, %s6
  %s9 = scalar_select 0, %s8, %s6
  $region1: #{tpu_custom_call.1} parent=0
    #allocation2 [shape = 'u8[1024]{0}', space=vmem, size = 0x400, scoped, tag = 'output window, operand 0, single buffered']
    #allocation3 [shape = 's32[1]{0}', space=sflag, size = 0x4, scoped, tag = 'scoped memory for tpu_custom_call.1']
    %10 = vsyncpa [#allocation3], 0
    // Predicated region
    $region2: #{tpu_custom_call.1} parent=1 // pred_check
      _
    $region3: #{tpu_custom_call.1} parent=1 // pred_check_branch
      %12 = sbr.rel (0) target = $region5
    $region4: #{tpu_custom_call.1} parent=1 // pred_region
      _
    $region5: #{tpu_custom_call.1} parent=1 // pred_fallthru
      _
    // Predicated region
    $region6: #{tpu_custom_call.1} parent=1 // pred_check
      _
    $region7: #{tpu_custom_call.1} parent=1 // pred_check_branch
      %14 = sbr.rel (0) target = $region9
    $region8: #{tpu_custom_call.1} parent=1 // pred_region
      _
    $region9: #{tpu_custom_call.1} parent=1 // pred_fallthru
      _
    // Predicated region
    $region10: #{tpu_custom_call.1} parent=1 // pred_check
      _
    $region11: #{tpu_custom_call.1} parent=1 // pred_check_branch
      %16 = sbr.rel (0) target = $region13
    $region12: #{tpu_custom_call.1} parent=1 // pred_region
      _
    $region13: #{tpu_custom_call.1} parent=1 // pred_fallthru
      _
    // Predicated region
    $region14: #{tpu_custom_call.1} parent=1 // pred_check
      _
    $region15: #{tpu_custom_call.1} parent=1 // pred_check_branch
      %18 = sbr.rel (0) target = $region17
    $region16: #{tpu_custom_call.1} parent=1 // pred_region
      _
    $region17: #{tpu_custom_call.1} parent=1 // pred_fallthru
      _
    // Predicated region
    $region18: #{tpu_custom_call.1} parent=1 // pred_check
      _
    $region19: #{tpu_custom_call.1} parent=1 // pred_check_branch
      %20 = sbr.rel (0) target = $region21
    $region20: #{tpu_custom_call.1} parent=1 // pred_region
      _
    $region21: #{tpu_custom_call.1} parent=1 // pred_fallthru
      _
    %v22 = vld [vmem:[%s0] sm:$0xff]
    %v23 = vld [vmem:[%s0 + $0x8] sm:$0xff]
    %v24 = vld [vmem:[%s0 + $0x10] sm:$0xff]
    %v25 = vld [vmem:[%s0 + $0x18] sm:$0xff]
    %v26 = vld [vmem:[%s1] sm:$0xf]
    %v27 = vld [vmem:[%s1 + $0x4] sm:$0xf]
    %v28 = vld [vmem:[%s1 + $0x8] sm:$0xf]
    %v29 = vld [vmem:[%s1 + $0xc] sm:$0xf]
    %v30 = vld [vmem:[%s1 + $0x10] sm:$0xf]
    %v31 = vld [vmem:[%s1 + $0x14] sm:$0xf]
    %v32 = vld [vmem:[%s1 + $0x18] sm:$0xf]
    %v33 = vld [vmem:[%s1 + $0x1c] sm:$0xf]
    %v34 = vld [vmem:[%s1 + $0x20] sm:$0xf]
    %v35 = vld [vmem:[%s1 + $0x24] sm:$0xf]
    %v36 = vld [vmem:[%s1 + $0x28] sm:$0xf]
    %v37 = vld [vmem:[%s1 + $0x2c] sm:$0xf]
    %v38 = vld [vmem:[%s2] sm:$0xff]
    %v39 = vld [vmem:[%s2 + $0x8] sm:$0xff]
    %v40 = vld [vmem:[%s2 + $0x10] sm:$0xff]
    %v41 = vld [vmem:[%s3] sm:$0x1]
    %v42 = vld [vmem:[%s4] sm:$0xff]
    %v43 = vld [vmem:[%s4 + $0x8] sm:$0xff]
    %v44 = vld [vmem:[%s4 + $0x10] sm:$0xff]
    %v57 = vunpack.c.l.b16 %v26
    %v58 = vunpack.c.l.b16 %v27
    %v59 = vunpack.c.l.b16 %v28
    %v60 = vunpack.c.l.b16 %v29
    %v61 = vunpack.c.l.b16 %v30
    %v62 = vunpack.c.l.b16 %v31
    %v63 = vunpack.c.l.b16 %v32
    %v64 = vunpack.c.l.b16 %v33
    %v65 = vunpack.c.l.b16 %v34
    %v66 = vunpack.c.l.b16 %v35
    %v67 = vunpack.c.l.b16 %v36
    %v68 = vunpack.c.l.b16 %v37
    %v69 = vpack.c.b16 %v58, %v57
    %v70 = vpack.c.b16 %v60, %v59
    %v71 = vpack.c.b16 %v62, %v61
    %v72 = vpack.c.b16 %v64, %v63
    %v73 = vpack.c.b16 %v66, %v65
    %v74 = vpack.c.b16 %v68, %v67
    %v79 = vunpack.c.l.b16 %v22
    %v80 = vunpack.c.h.b16 %v22
    %v81 = vunpack.c.l.b16 %v23
    %v82 = vunpack.c.h.b16 %v23
    %v83 = vunpack.c.l.b16 %v24
    %v84 = vunpack.c.h.b16 %v24
    %v85 = vunpack.c.l.b16 %v25
    %v86 = vunpack.c.h.b16 %v25
    %v87 = vpack.c.b16 %v81, %v79
    %v88 = vpack.c.b16 %v82, %v80
    %v89 = vpack.c.b16 %v85, %v83
    %v90 = vpack.c.b16 %v86, %v84
    %vm95 = vcmask 261120
    %v97 = vsel %vm95, %v69, 0
    %v100 = vsel %vm95, %v70, 0
    %v103 = vsel %vm95, %v71, 0
    %v106 = vsel %vm95, %v72, 0
    %v109 = vsel %vm95, %v73, 0
    %v112 = vsel %vm95, %v74, 0
    %114 = vmatprep.subr.bf16.mxu0 %v88
    %115 = vmatpush1.bf16.msra.mxu0 %v87
    %116 = vmatprep.subr.bf16.mxu0 %v90
    %117 = vmatpush1.bf16.msra.mxu0 %v89
    %118 = vmatprep.subr.bf16.mxu0 0
    %119 = vmatpush1.bf16.msra.mxu0 0
    %120 = vmatprep.subr.bf16.mxu0 0
    %121 = vmatpush1.bf16.msra.mxu0 0
    %122 = vmatprep.subr.bf16.mxu0 0
    %123 = vmatpush1.bf16.msra.mxu0 0
    %124 = vmatprep.subr.bf16.mxu0 0
    %125 = vmatpush1.bf16.msra.mxu0 0
    %126 = vmatprep.subr.bf16.mxu0 0
    %127 = vmatpush1.bf16.msra.mxu0 0
    %128 = vmatprep.subr.bf16.mxu0 0
    %129 = vmatpush1.bf16.msra.mxu0 0
    %130 = vmatprep.subr.bf16.mxu0 0
    %131 = vmatpush1.bf16.msra.mxu0 0
    %132 = vmatprep.subr.bf16.mxu0 0
    %133 = vmatpush1.bf16.msra.mxu0 0
    %134 = vmatprep.subr.bf16.mxu0 0
    %135 = vmatpush1.bf16.msra.mxu0 0
    %136 = vmatprep.subr.bf16.mxu0 0
    %137 = vmatpush1.bf16.msra.mxu0 0
    %138 = vmatprep.subr.bf16.mxu0 0
    %139 = vmatpush1.bf16.msra.mxu0 0
    %140 = vmatprep.subr.bf16.mxu0 0
    %141 = vmatpush1.bf16.msra.mxu0 0
    %142 = vmatprep.subr.bf16.mxu0 0
    %143 = vmatpush1.bf16.msra.mxu0 0
    %144 = vmatprep.subr.bf16.mxu0 0
    %145 = vmatpush1.bf16.msra.mxu0 0
    %146 = vmatprep.mubr.bf16.mxu0 0
    %147 = vmatmul.mubr.bf16.gmra.mrb[0].mxu0 %v97
    %v148 = vpop.f32.mrb[0].mxu0
    %v149 = vadd.f32 0.0, %v148
    %v150 = vpop.f32.mrb[0].mxu0
    %v151 = vadd.f32 0.0, %v150
    %v152 = vpop.f32.mrb[0].mxu0
    %v153 = vadd.f32 0.0, %v152
    %v154 = vpop.f32.mrb[0].mxu0
    %v155 = vadd.f32 0.0, %v154
    %156 = vmatprep.mubr.bf16.mxu0 0
    %157 = vmatmul.mubr.bf16.gmra.mrb[0].mxu0 %v100
    %v158 = vpop.f32.mrb[0].mxu0
    %v159 = vadd.f32 0.0, %v158
    %v160 = vpop.f32.mrb[0].mxu0
    %v161 = vadd.f32 0.0, %v160
    %v162 = vpop.f32.mrb[0].mxu0
    %v163 = vadd.f32 0.0, %v162
    %v164 = vpop.f32.mrb[0].mxu0
    %v165 = vadd.f32 0.0, %v164
    %166 = vmatprep.mubr.bf16.mxu0 0
    %167 = vmatmul.mubr.bf16.gmra.mrb[0].mxu0 %v103
    %v168 = vpop.f32.mrb[0].mxu0
    %v169 = vadd.f32 0.0, %v168
    %v170 = vpop.f32.mrb[0].mxu0
    %v171 = vadd.f32 0.0, %v170
    %v172 = vpop.f32.mrb[0].mxu0
    %v173 = vadd.f32 0.0, %v172
    %v174 = vpop.f32.mrb[0].mxu0
    %v175 = vadd.f32 0.0, %v174
    %176 = vmatprep.mubr.bf16.mxu0 0
    %177 = vmatmul.mubr.bf16.gmra.mrb[0].mxu0 %v106
    %v178 = vpop.f32.mrb[0].mxu0
    %v179 = vadd.f32 0.0, %v178
    %v180 = vpop.f32.mrb[0].mxu0
    %v181 = vadd.f32 0.0, %v180
    %v182 = vpop.f32.mrb[0].mxu0
    %v183 = vadd.f32 0.0, %v182
    %v184 = vpop.f32.mrb[0].mxu0
    %v185 = vadd.f32 0.0, %v184
    %186 = vmatprep.mubr.bf16.mxu0 0
    %187 = vmatmul.mubr.bf16.gmra.mrb[0].mxu0 %v109
    %v188 = vpop.f32.mrb[0].mxu0
    %v189 = vadd.f32 0.0, %v188
    %v190 = vpop.f32.mrb[0].mxu0
    %v191 = vadd.f32 0.0, %v190
    %v192 = vpop.f32.mrb[0].mxu0
    %v193 = vadd.f32 0.0, %v192
    %v194 = vpop.f32.mrb[0].mxu0
    %v195 = vadd.f32 0.0, %v194
    %196 = vmatprep.mubr.bf16.mxu0 0
    %197 = vmatmul.mubr.bf16.gmra.mrb[0].mxu0 %v112
    %v198 = vpop.f32.mrb[0].mxu0
    %v199 = vadd.f32 0.0, %v198
    %v200 = vpop.f32.mrb[0].mxu0
    %v201 = vadd.f32 0.0, %v200
    %v202 = vpop.f32.mrb[0].mxu0
    %v203 = vadd.f32 0.0, %v202
    %v204 = vpop.f32.mrb[0].mxu0
    %v205 = vadd.f32 0.0, %v204
    %206 = vdwg.mxu0
    %v208 = vlaneseq
    %v209 = vshrl.u32 %v208, 7
    %v210 = vsub.s32 0, %v209
    %v211 = vrot.slane %v41, %v210
    %v213 = vadd.f32 %v163, %v211
    %v214 = vadd.f32 %v169, %v211
    %v215 = vadd.f32 %v173, %v211
    %217 = vset.pattern.permute.xlu0 0
    %218 = vperm.xlu0 %217, %v42
    %v219 = vpop.permute.xlu0 %218
    %222 = vset.pattern.permute.xlu0 0
    %223 = vperm.xlu0 %222, %v43
    %v224 = vpop.permute.xlu0 %223
    %227 = vset.pattern.permute.xlu0 0
    %228 = vperm.xlu0 %227, %v44
    %v229 = vpop.permute.xlu0 %228
    %v231 = vadd.f32 %v193, %v219
    %v232 = vadd.f32 %v199, %v224
    %v233 = vadd.f32 %v203, %v229
    %234 = vmax.xlane.f32.xlu0 %v213
    %v235 = vpop.xlane.xlu0 %234
    %236 = vmax.xlane.f32.xlu0 %v214
    %v237 = vpop.xlane.xlu0 %236
    %238 = vmax.xlane.f32.xlu0 %v215
    %v239 = vpop.xlane.xlu0 %238
    %v240 = vsub.f32 %v213, %v235
    %v241 = vsub.f32 %v214, %v237
    %v242 = vsub.f32 %v215, %v239
    %v243 = vmul.f32 %v240, 1.442695
    %v244 = vpow.pop %v243
    %v245 = vmul.f32 %v241, 1.442695
    %v246 = vpow.pop %v245
    %v247 = vmul.f32 %v242, 1.442695
    %v248 = vpow.pop %v247
    %249 = vadd.xlane.f32.xlu0 %v244
    %v250 = vpop.xlane.xlu0 %249
    %251 = vadd.xlane.f32.xlu0 %v246
    %v252 = vpop.xlane.xlu0 %251
    %253 = vadd.xlane.f32.xlu0 %v248
    %v254 = vpop.xlane.xlu0 %253
    %v255 = vrcp.pop %v250
    %v256 = vmul.f32 %v244, %v255
    %v257 = vrcp.pop %v252
    %v258 = vmul.f32 %v246, %v257
    %v259 = vrcp.pop %v254
    %v260 = vmul.f32 %v248, %v259
    %v261 = vmax.f32 %v231, %v232
    %v262 = vmax.f32 %v261, %v233
    %v263 = vrot.slane %v262, 4
    %v264 = vmax.f32 %v262, %v263
    %v265 = vrot.slane %v264, 2
    %v266 = vmax.f32 %v264, %v265
    %v267 = vrot.slane %v266, 1
    %v268 = vmax.f32 %v266, %v267
    %v269 = vsub.f32 %v231, %v268
    %v270 = vsub.f32 %v232, %v268
    %v271 = vsub.f32 %v233, %v268
    %v272 = vmul.f32 %v269, 1.442695
    %v273 = vpow.pop %v272
    %v274 = vmul.f32 %v270, 1.442695
    %v275 = vpow.pop %v274
    %v276 = vmul.f32 %v271, 1.442695
    %v277 = vpow.pop %v276
    %v278 = vadd.f32 %v273, %v275
    %v279 = vadd.f32 %v278, %v277
    %v280 = vrot.slane %v279, 4
    %v281 = vadd.f32 %v279, %v280
    %v282 = vrot.slane %v281, 2
    %v283 = vadd.f32 %v281, %v282
    %v284 = vrot.slane %v283, 1
    %v285 = vadd.f32 %v283, %v284
    %v286 = vrcp.pop %v285
    %v287 = vmul.f32 %v273, %v286
    %v288 = vmul.f32 %v275, %v286
    %v289 = vmul.f32 %v277, %v286
    %v290 = vmul.f32 %v256, %v149
    %v291 = vmul.f32 %v258, %v153
    %v292 = vmul.f32 %v260, %v159
    %v293 = vmul.f32 %v287, %v179
    %v294 = vmul.f32 %v288, %v183
    %v295 = vmul.f32 %v289, %v189
    %v296 = vadd.f32 %v290, %v293
    %v297 = vadd.f32 %v291, %v294
    %v298 = vadd.f32 %v292, %v295
    %299 = vadd.xlane.f32.xlu0 %v296
    %v300 = vpop.xlane.xlu0 %299
    %301 = vadd.xlane.f32.xlu0 %v297
    %v302 = vpop.xlane.xlu0 %301
    %303 = vadd.xlane.f32.xlu0 %v298
    %v304 = vpop.xlane.xlu0 %303
    %v305 = vmul.f32 %v300, %v38
    %v306 = vmul.f32 %v302, %v39
    %v307 = vmul.f32 %v304, %v40
    %v308 = vadd.f32 %v305, %v306
    %v309 = vadd.f32 %v308, %v307
    %v310 = vrot.slane %v309, 4
    %v311 = vadd.f32 %v309, %v310
    %v312 = vrot.slane %v311, 2
    %v313 = vadd.f32 %v311, %v312
    %v314 = vrot.slane %v313, 1
    %v315 = vadd.f32 %v313, %v314
    %v316 = vadd.f32 %v165, %v211
    %v317 = vadd.f32 %v171, %v211
    %v318 = vadd.f32 %v175, %v211
    %v319 = vadd.f32 %v195, %v219
    %v320 = vadd.f32 %v201, %v224
    %v321 = vadd.f32 %v205, %v229
    %322 = vmax.xlane.f32.xlu0 %v316
    %v323 = vpop.xlane.xlu0 %322
    %324 = vmax.xlane.f32.xlu0 %v317
    %v325 = vpop.xlane.xlu0 %324
    %326 = vmax.xlane.f32.xlu0 %v318
    %v327 = vpop.xlane.xlu0 %326
    %v328 = vsub.f32 %v316, %v323
    %v329 = vsub.f32 %v317, %v325
    %v330 = vsub.f32 %v318, %v327
    %v331 = vmul.f32 %v328, 1.442695
    %v332 = vpow.pop %v331
    %v333 = vmul.f32 %v329, 1.442695
    %v334 = vpow.pop %v333
    %v335 = vmul.f32 %v330, 1.442695
    %v336 = vpow.pop %v335
    %337 = vadd.xlane.f32.xlu0 %v332
    %v338 = vpop.xlane.xlu0 %337
    %339 = vadd.xlane.f32.xlu0 %v334
    %v340 = vpop.xlane.xlu0 %339
    %341 = vadd.xlane.f32.xlu0 %v336
    %v342 = vpop.xlane.xlu0 %341
    %v343 = vrcp.pop %v338
    %v344 = vmul.f32 %v332, %v343
    %v345 = vrcp.pop %v340
    %v346 = vmul.f32 %v334, %v345
    %v347 = vrcp.pop %v342
    %v348 = vmul.f32 %v336, %v347
    %v349 = vmax.f32 %v319, %v320
    %v350 = vmax.f32 %v349, %v321
    %v351 = vrot.slane %v350, 4
    %v352 = vmax.f32 %v350, %v351
    %v353 = vrot.slane %v352, 2
    %v354 = vmax.f32 %v352, %v353
    %v355 = vrot.slane %v354, 1
    %v356 = vmax.f32 %v354, %v355
    %v357 = vsub.f32 %v319, %v356
    %v358 = vsub.f32 %v320, %v356
    %v359 = vsub.f32 %v321, %v356
    %v360 = vmul.f32 %v357, 1.442695
    %v361 = vpow.pop %v360
    %v362 = vmul.f32 %v358, 1.442695
    %v363 = vpow.pop %v362
    %v364 = vmul.f32 %v359, 1.442695
    %v365 = vpow.pop %v364
    %v366 = vadd.f32 %v361, %v363
    %v367 = vadd.f32 %v366, %v365
    %v368 = vrot.slane %v367, 4
    %v369 = vadd.f32 %v367, %v368
    %v370 = vrot.slane %v369, 2
    %v371 = vadd.f32 %v369, %v370
    %v372 = vrot.slane %v371, 1
    %v373 = vadd.f32 %v371, %v372
    %v374 = vrcp.pop %v373
    %v375 = vmul.f32 %v361, %v374
    %v376 = vmul.f32 %v363, %v374
    %v377 = vmul.f32 %v365, %v374
    %v378 = vmul.f32 %v344, %v151
    %v379 = vmul.f32 %v346, %v155
    %v380 = vmul.f32 %v348, %v161
    %v381 = vmul.f32 %v375, %v181
    %v382 = vmul.f32 %v376, %v185
    %v383 = vmul.f32 %v377, %v191
    %v384 = vadd.f32 %v378, %v381
    %v385 = vadd.f32 %v379, %v382
    %v386 = vadd.f32 %v380, %v383
    %387 = vadd.xlane.f32.xlu0 %v384
    %v388 = vpop.xlane.xlu0 %387
    %389 = vadd.xlane.f32.xlu0 %v385
    %v390 = vpop.xlane.xlu0 %389
    %391 = vadd.xlane.f32.xlu0 %v386
    %v392 = vpop.xlane.xlu0 %391
    %v393 = vmul.f32 %v388, %v38
    %v394 = vmul.f32 %v390, %v39
    %v395 = vmul.f32 %v392, %v40
    %v396 = vadd.f32 %v393, %v394
    %v397 = vadd.f32 %v396, %v395
    %v398 = vrot.slane %v397, 4
    %v399 = vadd.f32 %v397, %v398
    %v400 = vrot.slane %v399, 2
    %v401 = vadd.f32 %v399, %v400
    %v402 = vrot.slane %v401, 1
    %v403 = vadd.f32 %v401, %v402
    %vm404 = vcmask 1040384
    %v405 = vsel %vm404, %v315, %v403
    %406 = vst [vmem:[#allocation2] sm:$0x3] %v405
    // Predicated region
    $region22: #{tpu_custom_call.1} parent=1 // pred_check
      _
    $region23: #{tpu_custom_call.1} parent=1 // pred_check_branch
      %408 = sbr.rel (0) target = $region25
    $region24: #{tpu_custom_call.1} parent=1 // pred_region
      %s410 = ssub.s32 32, 32
      %411 = vsyncadd [#allocation3], %s410
      %s413 = sshll.u32 [#allocation2], 4
      %s414 = int_to_ptr.vmem [resolvable:$true] %s413
      %416 = dma.vmem_to_hbm [thread:$0]  %s414, 32, %s5, [#allocation3]
    $region25: #{tpu_custom_call.1} parent=1 // pred_fallthru
      _
    // Predicated region
    $region26: #{tpu_custom_call.1} parent=1 // pred_check
      _
    $region27: #{tpu_custom_call.1} parent=1 // pred_check_branch
      %418 = sbr.rel (0) target = $region29
    $region28: #{tpu_custom_call.1} parent=1 // pred_region
      %419 = dma.done [#allocation3], 32
    $region29: #{tpu_custom_call.1} parent=1 // pred_fallthru
      _
    %420 = vsyncpa [#allocation3], 1

</llo_original>
